<compile_context>
chip_gen: v7x
topology: tpu7x:2x2x1
jax: 0.10.0
libtpu: 0.0.40
codegen_flags: <defaults>
</compile_context>

<pallas_src>
import functools

import jax
import jax.numpy as jnp
from jax.experimental import pallas as pl
from jax.experimental.pallas import tpu as pltpu

# --- module hyper-parameters (NFLandAUE.__init__ defaults) ---
NUM_CLASSES = 10
ALPHA = 1.0        # NormalizedFocalLoss scale
BETA = 1.0         # AUELoss scale
GAMMA = 0.5        # NormalizedFocalLoss gamma (default)
A = 1.5            # AUELoss "a"
Q = 0.9            # AUELoss "q"
EPS = 1e-8         # defined in the reference module but unused in forward

INV_Q = 1.0 / Q
AUE_CONST = (A - 1.0) ** Q   # (a - 1)^q, compile-time constant


def _pow_const(base, expo):
    """base ** expo for a compile-time float exponent (EUP-friendly)."""
    if expo == 1.0:
        return base
    if expo == 0.5:
        return jnp.sqrt(base)
    if expo == 2.0:
        return base * base
    return jnp.exp(expo * jnp.log(base))


def _nfl_aue_kernel(pred_ref, labels_ref, out_ref, *, n_valid):
    i = pl.program_id(0)

    x = pred_ref[...].astype(jnp.float32)   # (C, TM) logits, classes on sublanes
    lbl = labels_ref[...]                    # (1, TM) int32
    c, tm = x.shape

    # Numerically stable softmax / log-softmax along the class (sublane) axis.
    xmax = jnp.max(x, axis=0, keepdims=True)              # (1, TM)
    xs = x - xmax
    ex = jnp.exp(xs)                                       # (C, TM) lane-dense EUP
    denom = jnp.sum(ex, axis=0, keepdims=True)             # (1, TM)
    log_denom = jnp.log(denom)
    inv_denom = 1.0 / denom                                # exact recip, reused C times
    logp = xs - log_denom                                  # log_softmax
    p = ex * inv_denom                                     # softmax (mul, not div)

    # One-hot selection via sublane-iota compare (no gather).
    cls = jax.lax.broadcasted_iota(jnp.int32, (c, tm), 0)
    onehot = cls == lbl                                    # (C, TM) bool

    # --- NormalizedFocalLoss ---
    # normalizor = sum_c -(1 - p_c)^gamma * logp_c
    w = _pow_const(jnp.maximum(1.0 - p, 0.0), GAMMA)
    normalizor = jnp.sum(-w * logp, axis=0, keepdims=True)            # (1, TM)
    logp_y = jnp.sum(jnp.where(onehot, logp, 0.0), axis=0, keepdims=True)
    p_y = jnp.sum(jnp.where(onehot, p, 0.0), axis=0, keepdims=True)
    w_y = _pow_const(jnp.maximum(1.0 - p_y, 0.0), GAMMA)
    nfl = ALPHA * (-w_y * logp_y) / normalizor                        # (1, TM)

    # --- AUELoss ---  ((a - p_y)^q - (a - 1)^q) * (1/q)
    aue = BETA * ((_pow_const(A - p_y, Q) - AUE_CONST) * INV_Q)       # (1, TM)

    # Ragged-tail masking: columns past the true batch size may contain
    # garbage (unpadded last block), so select with where (NaN-safe), not *0.
    col = jax.lax.broadcasted_iota(jnp.int32, (1, tm), 1) + i * tm
    valid = col < n_valid
    tot = jnp.where(valid, nfl + aue, 0.0)                            # (1, TM)

    # Per-tile partial sum, splatted over a full (8,128) vreg so the store is
    # unmasked and lane-dense; JAX reads element [0, 0] of each tile block.
    tot_sum = jnp.sum(tot)
    out_ref[...] = jnp.broadcast_to(tot_sum, (8, 128))


def _round_up(a, b):
    return ((a + b - 1) // b) * b


def _default_tile():
    # 32K lanes is within the recommended range for every generation
    # (v7x: 16-32K under its 64 MiB VMEM; v5e/v6e: 32-64K).  Bump to 64K on
    # 128 MiB-VMEM parts to further amortize the ~0.35 us per-grid-step cost.
    try:
        vmem = int(getattr(pltpu.get_tpu_info(), "vmem_capacity_bytes", 0))
    except Exception:
        vmem = 0
    return 65536 if vmem >= (96 << 20) else 32768


def nfl_and_aue(pred, labels, *, tm=None):
    """pred: (N, C) float logits, labels: (N,) int class ids -> scalar loss."""
    n, c = pred.shape
    assert c == NUM_CLASSES
    if tm is None:
        tm = _default_tile()

    # Single relayout pass: classes on sublanes, batch on lanes (no pad).
    # TODO(synk): emit (C, N) from the producing matmul to remove this pass.
    pred_t = jnp.transpose(pred)                        # (C, N), producer dtype kept
    labels_r = labels.astype(jnp.int32).reshape(1, n)   # (1, N) lane-dense, cheap

    # Cap the tile so there are >= 2 tiles whenever possible (lets
    # dimension_semantics=("parallel",) use both v7x TensorCores); tiles stay
    # multiples of 128 lanes.
    tm_eff = max(128, min(tm, _round_up(pl.cdiv(n, 2), 128)))
    num_tiles = pl.cdiv(n, tm_eff)

    # Right-size the VMEM limit from the tile: 2x double-buffered inputs plus
    # ~a dozen live (C, tm) f32 temporaries plus compiler-scratch margin.
    tile_bytes = c * tm_eff * 4
    vmem_limit = max(16 << 20, int(18 * tile_bytes + 8 * tm_eff + (8 << 20)))

    kernel = functools.partial(_nfl_aue_kernel, n_valid=n)

    parts = pl.pallas_call(
        kernel,
        out_shape=jax.ShapeDtypeStruct((num_tiles * 8, 128), jnp.float32),
        grid=(num_tiles,),
        in_specs=[
            pl.BlockSpec((c, tm_eff), lambda i: (0, i)),
            pl.BlockSpec((1, tm_eff), lambda i: (0, i)),
        ],
        out_specs=pl.BlockSpec((8, 128), lambda i: (i, 0)),
        compiler_params=pltpu.CompilerParams(
            dimension_semantics=("parallel",),
            vmem_limit_bytes=vmem_limit,
        ),
    )(pred_t, labels_r)

    per_tile = parts.reshape(num_tiles, 8, 128)[:, 0, 0]
    return jnp.sum(per_tile) / max(n, 1)


def _reference(pred, labels):
    """Pure-JAX mirror of the PyTorch NFLandAUE forward (for checking)."""
    x = pred.astype(jnp.float32)
    logpt = jax.nn.log_softmax(x, axis=1)
    p = jnp.exp(logpt)
    normalizor = jnp.sum(-1.0 * (1.0 - p) ** GAMMA * logpt, axis=1)
    logpt_y = jnp.take_along_axis(logpt, labels[:, None].astype(jnp.int32), axis=1)[:, 0]
    pt = jnp.exp(logpt_y)
    nfl = ALPHA * (-1.0 * (1.0 - pt) ** GAMMA * logpt_y) / normalizor
    nfl_loss = jnp.mean(nfl)

    sm = jax.nn.softmax(x, axis=1)
    oh = jax.nn.one_hot(labels, NUM_CLASSES, dtype=jnp.float32)
    p_y = jnp.sum(oh * sm, axis=1)
    aue = ((A - p_y) ** Q - (A - 1.0) ** Q) / Q
    aue_loss = jnp.mean(aue) * BETA
    return nfl_loss + aue_loss


if __name__ == "__main__":
    key = jax.random.PRNGKey(0)
    k_pred, k_lbl = jax.random.split(key)

    N = 300  # deliberately not a multiple of 128 (exercises ragged-block masking)
    pred = jax.random.normal(k_pred, (N, NUM_CLASSES), dtype=jnp.float32)
    labels = jax.random.randint(k_lbl, (N,), 0, NUM_CLASSES, dtype=jnp.int32)

    ref = jax.block_until_ready(_reference(pred, labels))

    # Default path (2 tiles via the megacore split, ragged last block) and an
    # explicit small-tile path (3 tiles of 128 lanes).
    for tile in (None, 128):
        loss = jax.block_until_ready(nfl_and_aue(pred, labels, tm=tile))
        assert jnp.allclose(loss, ref, rtol=1e-5, atol=1e-5), (tile, loss, ref)

    print("KERNEL_OK")
</pallas_src>

<mosaic_0001>
module attributes {stable_mosaic.version = 11 : i64} {
  func.func @_nfl_aue_kernel(%arg0: i32, %arg1: memref<10x256xf32, #tpu.memory_space<vmem>>, %arg2: memref<1x256xi32, #tpu.memory_space<vmem>>, %arg3: memref<8x128xf32, #tpu.memory_space<vmem>>) attributes {dimension_semantics = [#tpu.dimension_semantics<parallel>], iteration_bounds = array<i64: 2>, scalar_prefetch = 0 : i64, scratch_operands = 0 : i64, tpu.core_type = #tpu.core_type<tc>, window_params = [{transform_indices = @transform_0, window_bounds = array<i64: 10, 256>}, {transform_indices = @transform_1, window_bounds = array<i64: 1, 256>}, {transform_indices = @transform_2, window_bounds = array<i64: 8, 128>}]} {
    %c0 = arith.constant 0 : index
    %c0_0 = arith.constant 0 : index
    %0 = vector.load %arg1[%c0, %c0_0] : memref<10x256xf32, #tpu.memory_space<vmem>>, vector<10x256xf32>
    %c0_1 = arith.constant 0 : index
    %c0_2 = arith.constant 0 : index
    %1 = vector.load %arg2[%c0_1, %c0_2] : memref<1x256xi32, #tpu.memory_space<vmem>>, vector<1x256xi32>
    %cst = arith.constant dense<0xFF800000> : vector<256xf32>
    %2 = vector.multi_reduction <maximumf>, %0, %cst [0] : vector<10x256xf32> to vector<256xf32>
    %3 = vector.shape_cast %2 : vector<256xf32> to vector<1x256xf32>
    %4 = vector.broadcast %3 : vector<1x256xf32> to vector<10x256xf32>
    %5 = arith.subf %0, %4 : vector<10x256xf32>
    %6 = math.exp %5 : vector<10x256xf32>
    %cst_3 = arith.constant dense<0.000000e+00> : vector<256xf32>
    %7 = vector.multi_reduction <add>, %6, %cst_3 [0] : vector<10x256xf32> to vector<256xf32>
    %8 = vector.shape_cast %7 : vector<256xf32> to vector<1x256xf32>
    %9 = math.log %8 : vector<1x256xf32>
    %cst_4 = arith.constant 1.000000e+00 : f32
    %10 = vector.broadcast %cst_4 : f32 to vector<1x256xf32>
    %11 = arith.divf %10, %8 : vector<1x256xf32>
    %12 = vector.broadcast %9 : vector<1x256xf32> to vector<10x256xf32>
    %13 = arith.subf %5, %12 : vector<10x256xf32>
    %14 = vector.broadcast %11 : vector<1x256xf32> to vector<10x256xf32>
    %15 = arith.mulf %6, %14 : vector<10x256xf32>
    %16 = tpu.iota {dimensions = array<i32: 0>} : vector<10x256xi32>
    %17 = vector.broadcast %1 : vector<1x256xi32> to vector<10x256xi32>
    %18 = arith.cmpi eq, %16, %17 : vector<10x256xi32>
    %cst_5 = arith.constant 1.000000e+00 : f32
    %19 = vector.broadcast %cst_5 : f32 to vector<10x256xf32>
    %20 = arith.subf %19, %15 : vector<10x256xf32>
    %cst_6 = arith.constant 0.000000e+00 : f32
    %21 = vector.broadcast %cst_6 : f32 to vector<10x256xf32>
    %22 = arith.maximumf %20, %21 : vector<10x256xf32>
    %23 = math.sqrt %22 : vector<10x256xf32>
    %cst_7 = arith.constant 0.000000e+00 : f32
    %24 = vector.broadcast %cst_7 : f32 to vector<10x256xf32>
    %25 = arith.subf %24, %23 : vector<10x256xf32>
    %26 = arith.mulf %25, %13 : vector<10x256xf32>
    %cst_8 = arith.constant dense<0.000000e+00> : vector<256xf32>
    %27 = vector.multi_reduction <add>, %26, %cst_8 [0] : vector<10x256xf32> to vector<256xf32>
    %28 = vector.shape_cast %27 : vector<256xf32> to vector<1x256xf32>
    %cst_9 = arith.constant 0.000000e+00 : f32
    %29 = vector.broadcast %cst_9 : f32 to vector<10x256xf32>
    %30 = arith.select %18, %13, %29 : vector<10x256xi1>, vector<10x256xf32>
    %cst_10 = arith.constant dense<0.000000e+00> : vector<256xf32>
    %31 = vector.multi_reduction <add>, %30, %cst_10 [0] : vector<10x256xf32> to vector<256xf32>
    %32 = vector.shape_cast %31 : vector<256xf32> to vector<1x256xf32>
    %cst_11 = arith.constant 0.000000e+00 : f32
    %33 = vector.broadcast %cst_11 : f32 to vector<10x256xf32>
    %34 = arith.select %18, %15, %33 : vector<10x256xi1>, vector<10x256xf32>
    %cst_12 = arith.constant dense<0.000000e+00> : vector<256xf32>
    %35 = vector.multi_reduction <add>, %34, %cst_12 [0] : vector<10x256xf32> to vector<256xf32>
    %36 = vector.shape_cast %35 : vector<256xf32> to vector<1x256xf32>
    %cst_13 = arith.constant 1.000000e+00 : f32
    %37 = vector.broadcast %cst_13 : f32 to vector<1x256xf32>
    %38 = arith.subf %37, %36 : vector<1x256xf32>
    %cst_14 = arith.constant 0.000000e+00 : f32
    %39 = vector.broadcast %cst_14 : f32 to vector<1x256xf32>
    %40 = arith.maximumf %38, %39 : vector<1x256xf32>
    %41 = math.sqrt %40 : vector<1x256xf32>
    %cst_15 = arith.constant 0.000000e+00 : f32
    %42 = vector.broadcast %cst_15 : f32 to vector<1x256xf32>
    %43 = arith.subf %42, %41 : vector<1x256xf32>
    %44 = arith.mulf %43, %32 : vector<1x256xf32>
    %cst_16 = arith.constant 1.000000e+00 : f32
    %45 = vector.broadcast %cst_16 : f32 to vector<1x256xf32>
    %46 = arith.mulf %45, %44 : vector<1x256xf32>
    %47 = arith.divf %46, %28 : vector<1x256xf32>
    %cst_17 = arith.constant 1.500000e+00 : f32
    %48 = vector.broadcast %cst_17 : f32 to vector<1x256xf32>
    %49 = arith.subf %48, %36 : vector<1x256xf32>
    %50 = math.log %49 : vector<1x256xf32>
    %cst_18 = arith.constant 0.899999976 : f32
    %51 = vector.broadcast %cst_18 : f32 to vector<1x256xf32>
    %52 = arith.mulf %51, %50 : vector<1x256xf32>
    %53 = math.exp %52 : vector<1x256xf32>
    %cst_19 = arith.constant 0.535886705 : f32
    %54 = vector.broadcast %cst_19 : f32 to vector<1x256xf32>
    %55 = arith.subf %53, %54 : vector<1x256xf32>
    %cst_20 = arith.constant 1.11111116 : f32
    %56 = vector.broadcast %cst_20 : f32 to vector<1x256xf32>
    %57 = arith.mulf %55, %56 : vector<1x256xf32>
    %cst_21 = arith.constant 1.000000e+00 : f32
    %58 = vector.broadcast %cst_21 : f32 to vector<1x256xf32>
    %59 = arith.mulf %58, %57 : vector<1x256xf32>
    %60 = tpu.iota {dimensions = array<i32: 1>} : vector<1x256xi32>
    %c256_i32 = arith.constant 256 : i32
    %61 = arith.muli %arg0, %c256_i32 : i32
    %62 = vector.broadcast %61 : i32 to vector<1x256xi32>
    %63 = arith.addi %60, %62 : vector<1x256xi32>
    %c300_i32 = arith.constant 300 : i32
    %64 = vector.broadcast %c300_i32 : i32 to vector<1x256xi32>
    %65 = arith.cmpi slt, %63, %64 : vector<1x256xi32>
    %66 = arith.addf %47, %59 : vector<1x256xf32>
    %cst_22 = arith.constant 0.000000e+00 : f32
    %67 = vector.broadcast %cst_22 : f32 to vector<1x256xf32>
    %68 = arith.select %65, %66, %67 : vector<1x256xi1>, vector<1x256xf32>
    %69 = vector.shape_cast %68 : vector<1x256xf32> to vector<1x1x256xf32>
    %cst_23 = arith.constant dense<0.000000e+00> : vector<1xf32>
    %70 = vector.multi_reduction <add>, %69, %cst_23 [1, 2] : vector<1x1x256xf32> to vector<1xf32>
    %71 = vector.shape_cast %70 : vector<1xf32> to vector<1x1x1xf32>
    %72 = vector.extract %71[0, 0, 0] : f32 from vector<1x1x1xf32>
    %73 = vector.broadcast %72 : f32 to vector<8x128xf32>
    %c0_24 = arith.constant 0 : index
    %c0_25 = arith.constant 0 : index
    %74 = vector.load %arg3[%c0_24, %c0_25] : memref<8x128xf32, #tpu.memory_space<vmem>>, vector<8x128xf32>
    tpu.vector_store %arg3[%c0_24, %c0_25], %73 {strides = array<i32>} : memref<8x128xf32, #tpu.memory_space<vmem>>, vector<8x128xf32>,
    return
  }
  func.func @transform_0(%arg0: i32) -> (i32, i32) {
    %c0_i32 = arith.constant 0 : i32
    %c0_i32_0 = arith.constant 0 : i32
    return %c0_i32, %arg0 : i32, i32
  }
  func.func @transform_1(%arg0: i32) -> (i32, i32) {
    %c0_i32 = arith.constant 0 : i32
    %c0_i32_0 = arith.constant 0 : i32
    return %c0_i32, %arg0 : i32, i32
  }
  func.func @transform_2(%arg0: i32) -> (i32, i32) {
    %c0_i32 = arith.constant 0 : i32
    %c0_i32_0 = arith.constant 0 : i32
    return %arg0, %c0_i32 : i32, i32
  }
}

</mosaic_0001>

<llo_original>
// kernel: tpu_custom_call.1
$region0: #{tpu_custom_call.1}
  #allocation0 [shape = 'u32[]', space=smem, size = 0x4, offset = 0x4, fixed_abs, tag = 'smem constant byte address 0x4 - core index']
  #allocation1 [shape = 'u32[144,128]{1,0:T(1,128)}', space=vmem, size = 0x12000, scoped, tag = 'internal scratch']
  %s0 = inlined_call_operand.hbm [shape: f32[10,300], index: 0, kind: input, shape index: {}]
  %s1 = inlined_call_operand.vmem [shape: s32[1,300], index: 1, kind: input, shape index: {}]
  %s2 = inlined_call_operand.hbm [shape: f32[16,128], index: 2, kind: output, shape index: {}]
  %s3 = sld [smem:[#allocation0]]
  $region45: #{tpu_custom_call.1} parent=0
    _
  %s5 = ssub.s32 1, %s3
  %s6 = scalar_select 0, %s5, %s3
  $region1: #{tpu_custom_call.1} parent=0
    #allocation2 [shape = 'u8[32768]{0}', space=vmem, size = 0x8000, scoped, tag = 'input window, operand 0']
    #allocation3 [shape = 's32[2]{0}', space=sflag, size = 0x8, scoped, tag = 'scoped memory for tpu_custom_call.1']
    #allocation4 [shape = 's32[2]{0}', space=sflag, size = 0x8, scoped, tag = 'scoped memory for tpu_custom_call.1']
    #allocation5 [shape = 'u8[8192]{0}', space=vmem, size = 0x2000, scoped, tag = 'output window, operand 0']
    %7 = vsyncpa [#allocation3], 0
    %s8 = scalar_lea.sflag [#allocation3], 1
    %9 = vsyncpa %s8, 0
    %10 = vsyncpa [#allocation4], 0
    %s11 = scalar_lea.sflag [#allocation4], 1
    %12 = vsyncpa %s11, 0
    loop: start=0, step=1, limit=4
    $region2: #{tpu_custom_call.1} parent=1 // loop_pre_header
      _
    $region3: #{tpu_custom_call.1} parent=1 // loop_header
      %s14 = sphi 0, %s18
      %p15 = scmp.ge.s32.totalorder %s14, 4
      %s24 = sphi 0, %s26
      %s27 = sphi 0, %s24
      %s28 = sphi 0, %s27
      %s44 = sphi 0, %s28
      %s50 = sphi 0, %s52
      %s53 = sphi 0, %s50
      %s54 = sphi 0, %s53
      %s70 = sphi 0, %s54
      %s76 = sphi 0, %s78
      %s79 = sphi 0, %s76
      %s80 = sphi 0, %s79
      %s96 = sphi 0, %s80
    $region4: #{tpu_custom_call.1} parent=1 // loop_header_branch
      %17 = sbr.rel (%p15) target = $region8
    $region5: #{tpu_custom_call.1} parent=1 // loop_body
      %s19 = ssub.s32 %s14, 1
      %s20 = ssub.s32 %s14, 2
      %s21 = sadd.s32 %s14, 1
      %s22 = ssub.s32 %s14, %s21
      %p23 = scmp.eq.s32.totalorder %s22, 0
      %s25 = sadd.s32 %s24, 1
      %s26 = scalar_select %p23, %s24, %s25
      %p29 = pneg %p23
      %p30 = scmp.eq.s32.totalorder %s14, 1
      %p31 = por %p29, %p30
      %p32 = scmp.ne.s32.totalorder %s24, %s27
      %p33 = scmp.eq.s32.totalorder %s14, 0
      %p34 = por %p32, %p33
      %p35 = scmp.ne.s32.totalorder %s24, %s27
      %p36 = scmp.eq.s32.totalorder %s19, 1
      %p37 = por %p35, %p36
      %p38 = scmp.ne.s32.totalorder %s27, %s28
      %p39 = scmp.eq.s32.totalorder %s19, 0
      %p40 = por %p38, %p39
      %p41 = scmp.ne.s32.totalorder %s27, %s28
      %p42 = scmp.eq.s32.totalorder %s20, 1
      %p43 = por %p41, %p42
      %p45 = scmp.ne.s32.totalorder %s28, %s44
      %p46 = scmp.eq.s32.totalorder %s20, 0
      %p47 = por %p45, %p46
      %s48 = ssub.s32 %s14, %s21
      %p49 = scmp.eq.s32.totalorder %s48, 0
      %s51 = sadd.s32 %s50, 1
      %s52 = scalar_select %p49, %s50, %s51
      %p55 = pneg %p49
      %p56 = scmp.eq.s32.totalorder %s14, 1
      %p57 = por %p55, %p56
      %p58 = scmp.ne.s32.totalorder %s50, %s53
      %p59 = scmp.eq.s32.totalorder %s14, 0
      %p60 = por %p58, %p59
      %p61 = scmp.ne.s32.totalorder %s50, %s53
      %p62 = scmp.eq.s32.totalorder %s19, 1
      %p63 = por %p61, %p62
      %p64 = scmp.ne.s32.totalorder %s53, %s54
      %p65 = scmp.eq.s32.totalorder %s19, 0
      %p66 = por %p64, %p65
      %p67 = scmp.ne.s32.totalorder %s53, %s54
      %p68 = scmp.eq.s32.totalorder %s20, 1
      %p69 = por %p67, %p68
      %p71 = scmp.ne.s32.totalorder %s54, %s70
      %p72 = scmp.eq.s32.totalorder %s20, 0
      %p73 = por %p71, %p72
      %s74 = ssub.s32 %s14, %s21
      %p75 = scmp.eq.s32.totalorder %s74, 0
      %s77 = sadd.s32 %s76, 1
      %s78 = scalar_select %p75, %s76, %s77
      %p81 = pneg %p75
      %p82 = scmp.eq.s32.totalorder %s14, 1
      %p83 = por %p81, %p82
      %p84 = scmp.ne.s32.totalorder %s76, %s79
      %p85 = scmp.eq.s32.totalorder %s14, 0
      %p86 = por %p84, %p85
      %p87 = scmp.ne.s32.totalorder %s76, %s79
      %p88 = scmp.eq.s32.totalorder %s19, 1
      %p89 = por %p87, %p88
      %p90 = scmp.ne.s32.totalorder %s79, %s80
      %p91 = scmp.eq.s32.totalorder %s19, 0
      %p92 = por %p90, %p91
      %p93 = scmp.ne.s32.totalorder %s79, %s80
      %p94 = scmp.eq.s32.totalorder %s20, 1
      %p95 = por %p93, %p94
      %p97 = scmp.ne.s32.totalorder %s80, %s96
      %p98 = scmp.eq.s32.totalorder %s20, 0
      %p99 = por %p97, %p98
      %p100 = scmp.le.s32.totalorder 1, %s14
      %p101 = scmp.lt.s32.totalorder %s14, 3
      %p102 = pnand %p100, %p101
      %p103 = pneg %p102
      // Predicated region
      $region9: #{tpu_custom_call.1} parent=5 // pred_check
        _
      $region10: #{tpu_custom_call.1} parent=5 // pred_check_branch
        %105 = sbr.rel (%p102) target = $region12
      $region11: #{tpu_custom_call.1} parent=5 // pred_region
        %s106 = ssub.s32 %s14, 1
      $region12: #{tpu_custom_call.1} parent=5 // pred_fallthru
        _
      %p107 = scmp.lt.s32.totalorder %s14, 2
      // Predicated region
      $region13: #{tpu_custom_call.1} parent=5 // pred_check
        %p108 = pneg %p107
      $region14: #{tpu_custom_call.1} parent=5 // pred_check_branch
        %110 = sbr.rel (%p108) target = $region16
      $region15: #{tpu_custom_call.1} parent=5 // pred_region
        // Predicated region
        $region17: #{tpu_custom_call.1} parent=15 // pred_check
          %p111 = pneg %p34
        $region18: #{tpu_custom_call.1} parent=15 // pred_check_branch
          %113 = sbr.rel (%p111) target = $region20
        $region19: #{tpu_custom_call.1} parent=15 // pred_region
          %s114 = sand.u32 %s24, 1
          %s115 = scalar_lea.sflag [#allocation3], %s114
          %s116 = sand.u32 %s24, 1
          %s117 = smul.addr %s116, 32
          %s118 = scalar_lea.vmem [#allocation2], %s117
          %s119 = smul.u32 2, %s14
          %s120 = ssub.s32 3, %s119
          %p121 = scmp.lt.s32.totalorder %s120, 2
          %s122 = scalar_select %p121, %s120, 2
          %s123 = smul.u32 256, %s122
          %s125 = ssub.s32 512, %s123
          %126 = vsyncadd %s115, %s125
          %p127 = scmp.ne.s32.totalorder 0, %s123
          %s128 = smul.addr %s119, 128
          %s129 = scalar_lea.hbm %s0, %s128
          %s130 = smul.u32 %s122, 8
          %s131 = smul.u32 %s130, 2
          %s132 = sshll.u32 %s118, 4
          %s133 = int_to_ptr.vmem [resolvable:$true] %s132
          %s134 = sshll.u32 %s131, 4
          %138 = dma.hbm_to_vmem [thread:$0]  (%p127), %s129, %s134, %s133, %s115, 384, 256, %s130
        $region20: #{tpu_custom_call.1} parent=15 // pred_fallthru
          _
        // Predicated region
        $region21: #{tpu_custom_call.1} parent=15 // pred_check
          %p139 = pneg %p60
        $region22: #{tpu_custom_call.1} parent=15 // pred_check_branch
          %141 = sbr.rel (%p139) target = $region24
        $region23: #{tpu_custom_call.1} parent=15 // pred_region
          %s142 = smul.u32 2, %s14
          %s143 = ssub.s32 3, %s142
          %p144 = scmp.lt.s32.totalorder %s143, 2
          %s145 = scalar_select %p144, %s143, 2
          %s146 = smul.u32 16, %s145
          %p147 = scmp.lt.s32.totalorder %s142, 2
          %s148 = scalar_select %p147, %s142, 2
          %s149 = scalar_lea.vmem %s1, %s148
          %s150 = smul.u32 2, %s14
          %s151 = ssub.s32 3, %s150
          %p152 = scmp.lt.s32.totalorder %s151, 2
          %s153 = scalar_select %p152, %s151, 2
          %s154 = smul.u32 16, %s153
        $region24: #{tpu_custom_call.1} parent=15 // pred_fallthru
          _
      $region16: #{tpu_custom_call.1} parent=5 // pred_fallthru
        _
      %p155 = scmp.le.s32.totalorder 1, %s14
      %p156 = scmp.lt.s32.totalorder %s14, 3
      %p157 = pnand %p155, %p156
      %p158 = pneg %p157
      // Predicated region
      $region25: #{tpu_custom_call.1} parent=5 // pred_check
        _
      $region26: #{tpu_custom_call.1} parent=5 // pred_check_branch
        %160 = sbr.rel (%p157) target = $region28
      $region27: #{tpu_custom_call.1} parent=5 // pred_region
        %s161 = ssub.s32 %s14, 1
        %s162 = sand.u32 %s27, 1
        %s163 = scalar_lea.sflag [#allocation3], %s162
        %s164 = sand.u32 %s27, 1
        %s165 = smul.addr %s164, 32
        %s166 = scalar_lea.vmem [#allocation2], %s165
        // Predicated region
        $region29: #{tpu_custom_call.1} parent=27 // pred_check
          %p167 = pneg %p40
        $region30: #{tpu_custom_call.1} parent=27 // pred_check_branch
          %169 = sbr.rel (%p167) target = $region32
        $region31: #{tpu_custom_call.1} parent=27 // pred_region
          %170 = dma.done %s163, 512
        $region32: #{tpu_custom_call.1} parent=27 // pred_fallthru
          _
        %s171 = sand.u32 %s27, 1
        %s172 = scalar_lea.sflag [#allocation3], %s171
        %s173 = sand.u32 %s27, 1
        %s174 = smul.addr %s173, 32
        %s175 = scalar_lea.vmem [#allocation2], %s174
        %p176 = pneg %p40
        %p177 = pneg %p37
        %s178 = smul.u32 2, %s19
        %s179 = ssub.s32 3, %s178
        %p180 = scmp.lt.s32.totalorder %s179, 2
        %s181 = scalar_select %p180, %s179, 2
        %s182 = smul.u32 16, %s181
        %p183 = scmp.lt.s32.totalorder %s178, 2
        %s184 = scalar_select %p183, %s178, 2
        %s185 = scalar_lea.vmem %s1, %s184
        %p186 = pneg %p66
        %p187 = pneg %p63
        %p188 = pneg %p92
        %p189 = pneg %p89
        %s190 = sand.u32 %s79, 1
        %s191 = scalar_lea.sflag [#allocation4], %s190
        %s192 = sand.u32 %s79, 1
        %s193 = smul.addr %s192, 8
        %s194 = scalar_lea.vmem [#allocation5], %s193
        %s195 = smul.u32 2, %s19
        %s196 = ssub.s32 3, %s195
        %p197 = scmp.lt.s32.totalorder %s196, 2
        %s198 = scalar_select %p197, %s196, 2
        %s199 = smul.u32 256, %s198
        %s200 = smul.u32 2, %s19
        %s201 = ssub.s32 3, %s200
        %p202 = scmp.lt.s32.totalorder %s201, 2
        %s203 = scalar_select %p202, %s201, 2
        %s204 = smul.u32 16, %s203
        %p205 = scmp.lt.s32.totalorder %s200, 2
        %s206 = scalar_select %p205, %s200, 2
        %s207 = scalar_lea.vmem %s1, %s206
        %s208 = smul.u32 2, %s19
        %s209 = ssub.s32 3, %s208
        %p210 = scmp.lt.s32.totalorder %s209, 2
        %s211 = scalar_select %p210, %s209, 2
        %s212 = smul.u32 16, %s211
        %v213 = vld [vmem:[%s166] sm:$0xff]
        %v214 = vld [vmem:[%s166 + $0x8] sm:$0xff]
        %v215 = vld [vmem:[%s166 + $0x10] sm:$0x3]
        %v216 = vld [vmem:[%s166 + $0x18] sm:$0x3]
        %v217 = vld [vmem:[%s207] sm:$0x3]
        %vm218 = vcmask 1041408
        %v219 = vsel %vm218, %v215, -inf
        %v220 = vmax.f32 %v213, %v219
        %v221 = vrot.slane %v220, 4
        %v222 = vmax.f32 %v220, %v221
        %v223 = vrot.slane %v222, 2
        %v224 = vmax.f32 %v222, %v223
        %v225 = vrot.slane %v224, 1
        %v226 = vmax.f32 %v224, %v225
        %v227 = vsel %vm218, %v216, -inf
        %v228 = vmax.f32 %v214, %v227
        %v229 = vrot.slane %v228, 4
        %v230 = vmax.f32 %v228, %v229
        %v231 = vrot.slane %v230, 2
        %v232 = vmax.f32 %v230, %v231
        %v233 = vrot.slane %v232, 1
        %v234 = vmax.f32 %v232, %v233
        %v235 = vsub.f32 %v213, %v226
        %v236 = vsub.f32 %v214, %v234
        %v237 = vsub.f32 %v215, %v226
        %v238 = vsub.f32 %v216, %v234
        %v239 = vmul.f32 %v235, 1.442695
        %v240 = vpow.pop %v239
        %v241 = vmul.f32 %v236, 1.442695
        %v242 = vpow.pop %v241
        %v243 = vmul.f32 %v237, 1.442695
        %v244 = vpow.pop %v243
        %v245 = vmul.f32 %v238, 1.442695
        %v246 = vpow.pop %v245
        %v247 = vsel %vm218, %v244, 0.0
        %v248 = vadd.f32 %v240, %v247
        %v249 = vrot.slane %v248, 4
        %v250 = vadd.f32 %v248, %v249
        %v251 = vrot.slane %v250, 2
        %v252 = vadd.f32 %v250, %v251
        %v253 = vrot.slane %v252, 1
        %v254 = vadd.f32 %v252, %v253
        %v255 = vsel %vm218, %v246, 0.0
        %v256 = vadd.f32 %v242, %v255
        %v257 = vrot.slane %v256, 4
        %v258 = vadd.f32 %v256, %v257
        %v259 = vrot.slane %v258, 2
        %v260 = vadd.f32 %v258, %v259
        %v261 = vrot.slane %v260, 1
        %v262 = vadd.f32 %v260, %v261
        %v263 = vlog2.pop %v254
        %v264 = vmul.f32 %v263, 0.6931472
        %v265 = vlog2.pop %v262
        %v266 = vmul.f32 %v265, 0.6931472
        %v267 = vrcp.pop %v254
        %v268 = vmul.f32 1.0, %v267
        %v269 = vrcp.pop %v262
        %v270 = vmul.f32 1.0, %v269
        %v271 = vsub.f32 %v235, %v264
        %v272 = vsub.f32 %v236, %v266
        %v273 = vsub.f32 %v237, %v264
        %v274 = vsub.f32 %v238, %v266
        %v275 = vmul.f32 %v240, %v268
        %v276 = vmul.f32 %v242, %v270
        %v277 = vmul.f32 %v244, %v268
        %v278 = vmul.f32 %v246, %v270
        %v279 = vlaneseq
        %v280 = vshrl.u32 %v279, 7
        %v281 = vadd.s32 %v280, 8
        %v282 = vlaneseq
        %v283 = vshrl.u32 %v282, 7
        %v284 = vsub.s32 0, %v283
        %v285 = vrot.slane %v217, %v284
        %v286 = vlaneseq
        %v287 = vshrl.u32 %v286, 7
        %v288 = vsub.s32 1, %v287
        %v289 = vrot.slane %v217, %v288
        %vm290 = vcmp.eq.s32.totalorder %v280, %v285
        %vm291 = vcmp.eq.s32.totalorder %v280, %v289
        %vm292 = vcmp.eq.s32.totalorder %v281, %v285
        %vm293 = vcmp.eq.s32.totalorder %v281, %v289
        %v294 = vsub.f32 1.0, %v275
        %v295 = vsub.f32 1.0, %v276
        %v296 = vsub.f32 1.0, %v277
        %v297 = vsub.f32 1.0, %v278
        %v298 = vmax.f32 %v294, 0.0
        %v299 = vmax.f32 %v295, 0.0
        %v300 = vmax.f32 %v296, 0.0
        %v301 = vmax.f32 %v297, 0.0
        %v302 = vrsqrt.pop %v298
        %v303 = vmul.f32 %v298, %v302
        %vm304 = vcmp.eq.f32.partialorder %v298, inf
        %v305 = vsel %vm304, %v298, %v303
        %vm306 = vcmp.eq.f32.partialorder %v298, 0.0
        %v307 = vand.u32 %v298, 2147483648
        %v308 = vsel %vm306, %v307, %v305
        %v309 = vrsqrt.pop %v299
        %v310 = vmul.f32 %v299, %v309
        %vm311 = vcmp.eq.f32.partialorder %v299, inf
        %v312 = vsel %vm311, %v299, %v310
        %vm313 = vcmp.eq.f32.partialorder %v299, 0.0
        %v314 = vand.u32 %v299, 2147483648
        %v315 = vsel %vm313, %v314, %v312
        %v316 = vrsqrt.pop %v300
        %v317 = vmul.f32 %v300, %v316
        %vm318 = vcmp.eq.f32.partialorder %v300, inf
        %v319 = vsel %vm318, %v300, %v317
        %vm320 = vcmp.eq.f32.partialorder %v300, 0.0
        %v321 = vand.u32 %v300, 2147483648
        %v322 = vsel %vm320, %v321, %v319
        %v323 = vrsqrt.pop %v301
        %v324 = vmul.f32 %v301, %v323
        %vm325 = vcmp.eq.f32.partialorder %v301, inf
        %v326 = vsel %vm325, %v301, %v324
        %vm327 = vcmp.eq.f32.partialorder %v301, 0.0
        %v328 = vand.u32 %v301, 2147483648
        %v329 = vsel %vm327, %v328, %v326
        %v330 = vsub.f32 0.0, %v308
        %v331 = vsub.f32 0.0, %v315
        %v332 = vsub.f32 0.0, %v322
        %v333 = vsub.f32 0.0, %v329
        %v334 = vmul.f32 %v330, %v271
        %v335 = vmul.f32 %v331, %v272
        %v336 = vmul.f32 %v332, %v273
        %v337 = vmul.f32 %v333, %v274
        %v338 = vsel %vm218, %v336, 0.0
        %v339 = vadd.f32 %v334, %v338
        %v340 = vrot.slane %v339, 4
        %v341 = vadd.f32 %v339, %v340
        %v342 = vrot.slane %v341, 2
        %v343 = vadd.f32 %v341, %v342
        %v344 = vrot.slane %v343, 1
        %v345 = vadd.f32 %v343, %v344
        %v346 = vsel %vm218, %v337, 0.0
        %v347 = vadd.f32 %v335, %v346
        %v348 = vrot.slane %v347, 4
        %v349 = vadd.f32 %v347, %v348
        %v350 = vrot.slane %v349, 2
        %v351 = vadd.f32 %v349, %v350
        %v352 = vrot.slane %v351, 1
        %v353 = vadd.f32 %v351, %v352
        %v354 = vsel %vm290, %v271, 0.0
        %v355 = vsel %vm291, %v272, 0.0
        %v356 = vsel %vm292, %v273, 0.0
        %v357 = vsel %vm293, %v274, 0.0
        %v358 = vsel %vm218, %v356, 0.0
        %v359 = vadd.f32 %v354, %v358
        %v360 = vrot.slane %v359, 4
        %v361 = vadd.f32 %v359, %v360
        %v362 = vrot.slane %v361, 2
        %v363 = vadd.f32 %v361, %v362
        %v364 = vrot.slane %v363, 1
        %v365 = vadd.f32 %v363, %v364
        %v366 = vsel %vm218, %v357, 0.0
        %v367 = vadd.f32 %v355, %v366
        %v368 = vrot.slane %v367, 4
        %v369 = vadd.f32 %v367, %v368
        %v370 = vrot.slane %v369, 2
        %v371 = vadd.f32 %v369, %v370
        %v372 = vrot.slane %v371, 1
        %v373 = vadd.f32 %v371, %v372
        %v374 = vsel %vm290, %v275, 0.0
        %v375 = vsel %vm291, %v276, 0.0
        %v376 = vsel %vm292, %v277, 0.0
        %v377 = vsel %vm293, %v278, 0.0
        %v378 = vsel %vm218, %v376, 0.0
        %v379 = vadd.f32 %v374, %v378
        %v380 = vrot.slane %v379, 4
        %v381 = vadd.f32 %v379, %v380
        %v382 = vrot.slane %v381, 2
        %v383 = vadd.f32 %v381, %v382
        %v384 = vrot.slane %v383, 1
        %v385 = vadd.f32 %v383, %v384
        %v386 = vsel %vm218, %v377, 0.0
        %v387 = vadd.f32 %v375, %v386
        %v388 = vrot.slane %v387, 4
        %v389 = vadd.f32 %v387, %v388
        %v390 = vrot.slane %v389, 2
        %v391 = vadd.f32 %v389, %v390
        %v392 = vrot.slane %v391, 1
        %v393 = vadd.f32 %v391, %v392
        %v394 = vsub.f32 1.0, %v385
        %v395 = vsub.f32 1.0, %v393
        %v396 = vmax.f32 %v394, 0.0
        %v397 = vmax.f32 %v395, 0.0
        %v398 = vrsqrt.pop %v396
        %v399 = vmul.f32 %v396, %v398
        %vm400 = vcmp.eq.f32.partialorder %v396, inf
        %v401 = vsel %vm400, %v396, %v399
        %vm402 = vcmp.eq.f32.partialorder %v396, 0.0
        %v403 = vand.u32 %v396, 2147483648
        %v404 = vsel %vm402, %v403, %v401
        %v405 = vrsqrt.pop %v397
        %v406 = vmul.f32 %v397, %v405
        %vm407 = vcmp.eq.f32.partialorder %v397, inf
        %v408 = vsel %vm407, %v397, %v406
        %vm409 = vcmp.eq.f32.partialorder %v397, 0.0
        %v410 = vand.u32 %v397, 2147483648
        %v411 = vsel %vm409, %v410, %v408
        %v412 = vsub.f32 0.0, %v404
        %v413 = vsub.f32 0.0, %v411
        %v414 = vmul.f32 %v412, %v365
        %v415 = vmul.f32 %v413, %v373
        %v416 = vrcp.pop %v345
        %v417 = vmul.f32 %v414, %v416
        %v418 = vrcp.pop %v353
        %v419 = vmul.f32 %v415, %v418
        %v420 = vsub.f32 1.5, %v385
        %v421 = vsub.f32 1.5, %v393
        %v422 = vlog2.pop %v420
        %v423 = vmul.f32 %v422, 0.6931472
        %v424 = vlog2.pop %v421
        %v425 = vmul.f32 %v424, 0.6931472
        %v426 = vmul.f32 %v423, 0.9
        %v427 = vmul.f32 %v425, 0.9
        %v428 = vmul.f32 %v426, 1.442695
        %v429 = vpow.pop %v428
        %v430 = vmul.f32 %v427, 1.442695
        %v431 = vpow.pop %v430
        %v432 = vsub.f32 %v429, 0.5358867
        %v433 = vsub.f32 %v431, 0.5358867
        %v434 = vmul.f32 %v432, 1.1111112
        %v435 = vmul.f32 %v433, 1.1111112
        %v436 = vlaneseq
        %v437 = vand.u32 %v436, 127
        %v438 = vadd.s32 %v437, 128
        %s439 = smul.u32 %s19, 256
        %v440 = vstv %s439
        %v441 = vadd.s32 %v437, %v440
        %v442 = vadd.s32 %v438, %v440
        %vm443 = vcmp.lt.s32.totalorder %v441, 300
        %vm444 = vcmp.lt.s32.totalorder %v442, 300
        %v445 = vadd.f32 %v417, %v434
        %v446 = vadd.f32 %v419, %v435
        %v447 = vsel %vm443, %v445, 0.0
        %v448 = vsel %vm444, %v446, 0.0
        %vm449 = vcmask 1040384
        %v450 = vsel %vm449, %v447, 0.0
        %v451 = vsel %vm449, %v448, 0.0
        %v452 = vadd.f32 %v450, %v451
        %453 = vadd.xlane.f32.xlu0 %v452
        %v454 = vpop.xlane.xlu0 %453
        %v455 = vrot.slane %v454, 4
        %v456 = vadd.f32 %v454, %v455
        %v457 = vrot.slane %v456, 2
        %v458 = vadd.f32 %v456, %v457
        %v459 = vrot.slane %v458, 1
        %v460 = vadd.f32 %v458, %v459
        %s461 = vtos %v460
        %v462 = vstv %s461
        %463 = vst [vmem:[%s194] sm:$0xff] %v462
        %s464 = sand.u32 %s79, 1
        %s465 = scalar_lea.sflag [#allocation4], %s464
        %s466 = sand.u32 %s79, 1
        %s467 = smul.addr %s466, 8
        %s468 = scalar_lea.vmem [#allocation5], %s467
        // Predicated region
        $region33: #{tpu_custom_call.1} parent=27 // pred_check
          %p469 = pneg %p89
        $region34: #{tpu_custom_call.1} parent=27 // pred_check_branch
          %471 = sbr.rel (%p469) target = $region36
        $region35: #{tpu_custom_call.1} parent=27 // pred_region
          %s473 = ssub.s32 128, 128
          %474 = vsyncadd %s465, %s473
          %s475 = smul.addr %s19, 128
          %s476 = scalar_lea.hbm %s2, %s475
          %s478 = sshll.u32 %s468, 4
          %s479 = int_to_ptr.vmem [resolvable:$true] %s478
          %481 = dma.vmem_to_hbm [thread:$0]  %s479, 128, %s476, %s465
        $region36: #{tpu_custom_call.1} parent=27 // pred_fallthru
          _
      $region28: #{tpu_custom_call.1} parent=5 // pred_fallthru
        _
      %p482 = scmp.le.s32.totalorder 2, %s14
      // Predicated region
      $region37: #{tpu_custom_call.1} parent=5 // pred_check
        %p483 = pneg %p482
      $region38: #{tpu_custom_call.1} parent=5 // pred_check_branch
        %485 = sbr.rel (%p483) target = $region40
      $region39: #{tpu_custom_call.1} parent=5 // pred_region
        %s486 = ssub.s32 %s14, 2
        // Predicated region
        $region41: #{tpu_custom_call.1} parent=39 // pred_check
          %p487 = pneg %p95
        $region42: #{tpu_custom_call.1} parent=39 // pred_check_branch
          %489 = sbr.rel (%p487) target = $region44
        $region43: #{tpu_custom_call.1} parent=39 // pred_region
          %s490 = sand.u32 %s80, 1
          %s491 = scalar_lea.sflag [#allocation4], %s490
          %s492 = sand.u32 %s80, 1
          %s493 = smul.addr %s492, 8
          %s494 = scalar_lea.vmem [#allocation5], %s493
          %495 = dma.done %s491, 128
        $region44: #{tpu_custom_call.1} parent=39 // pred_fallthru
          _
      $region40: #{tpu_custom_call.1} parent=5 // pred_fallthru
        _
    $region6: #{tpu_custom_call.1} parent=1 // loop_footer
      %s18 = sadd.s32 1, %s14
    $region7: #{tpu_custom_call.1} parent=1 // loop_footer_branch
      %13 = sbr.rel target = $region3
    $region8: #{tpu_custom_call.1} parent=1 // loop_exit
      _
    %496 = vsyncpa [#allocation3], 1
    %s497 = scalar_lea.sflag [#allocation3], 1
    %498 = vsyncpa %s497, 1
    %499 = vsyncpa [#allocation4], 1
    %s500 = scalar_lea.sflag [#allocation4], 1
    %501 = vsyncpa %s500, 1

</llo_original>
